<compile_context>
chip_gen: v7x
topology: tpu7x:2x2x1
jax: 0.10.0
libtpu: 0.0.40
codegen_flags: <defaults>
</compile_context>

<pallas_src>
import functools

import jax
import jax.numpy as jnp
from jax.experimental import pallas as pl
from jax.experimental.pallas import tpu as pltpu

_BN_EPS = 1e-5
_NORM_EPS = 1e-12


def _bn_stats_kernel(x_ref, gamma_ref, beta_ref, scale_ref, shift_ref,
                     sum_ref, ssq_ref, *, inv_n):
    """Pass 1: global per-channel BN batch stats folded into scale/shift.

    x_ref:     (Bt, Cin, H*W) f32 (one batch tile per grid step)
    gamma_ref: (Cin, 1)   beta_ref: (Cin, 1)
    scale_ref: (Cin, 1)   out: gamma / sqrt(var + eps)
    shift_ref: (Cin, 1)   out: beta - mean * scale
    sum_ref / ssq_ref: (Cin, 1) VMEM scratch accumulators (persist across grid).
    """
    i = pl.program_id(0)

    @pl.when(i == 0)
    def _():
        sum_ref[...] = jnp.zeros_like(sum_ref)
        ssq_ref[...] = jnp.zeros_like(ssq_ref)

    x = x_ref[...]                                                 # (Bt, Cin, HW)
    # Lane reduction first (fast axis), then the small batch-tile reduction.
    sum_ref[...] += jnp.sum(jnp.sum(x, axis=2, keepdims=True), axis=0)
    ssq_ref[...] += jnp.sum(jnp.sum(x * x, axis=2, keepdims=True), axis=0)

    @pl.when(i == pl.num_programs(0) - 1)
    def _():
        mean = sum_ref[...] * inv_n
        var = ssq_ref[...] * inv_n - mean * mean                   # biased variance
        inv_std = jax.lax.rsqrt(var + _BN_EPS)                     # EUP rsqrt
        scale = gamma_ref[...] * inv_std
        scale_ref[...] = scale
        shift_ref[...] = beta_ref[...] - mean * scale


def _bn_conv_norm_kernel(x_ref, scale_ref, shift_ref, w_ref, b_ref,
                         s_reduce_ref, s_bcast_ref, o_ref):
    """Pass 2 (per batch tile): BN apply + 1x1 conv (VPU) + W-axis L2 norm.

    x_ref:        (Bt, Cin, H*W)   scale/shift: (Cin, 1)
    w_ref:        (Cout, Cin)      b_ref:       (Cout, 1)
    s_reduce_ref: (H*W, H) 0/1 segment matrix (sum over W)
    s_bcast_ref:  (H, H*W) 0/1 segment matrix (broadcast back over W)
    o_ref:        (Bt, Cout, H*W)  lane-dense NCHW output block
    """
    bt = x_ref.shape[0]
    cin = x_ref.shape[1]

    # Loop-invariant loads hoisted out of the (small, unrolled) batch loop.
    w = w_ref[...]                                                 # (Cout, Cin)
    bias = b_ref[...]                                              # (Cout, 1)
    scale = scale_ref[...]                                         # (Cin, 1)
    shift = shift_ref[...]                                         # (Cin, 1)
    s_reduce = s_reduce_ref[...]                                   # (HW, H)
    s_bcast = s_bcast_ref[...]                                     # (H, HW)

    for bi in range(bt):                                           # unrolled, Bt small
        # BatchNorm apply with globally computed, affine-folded scale/shift.
        xn = x_ref[bi] * scale + shift                             # (Cin, HW)

        # 1x1 conv as Cin broadcast multiply-adds on the VPU (MXU would be <1% used).
        acc = w[:, 0:1] * xn[0:1, :]                               # (Cout, HW)
        for ci in range(1, cin):
            acc = acc + w[:, ci:ci + 1] * xn[ci:ci + 1, :]
        y = acc + bias                                             # (Cout, HW)

        # L2 normalize over W (last NCHW axis) via lane-dense segment matmuls:
        # (Cout,HW)@(HW,H) -> per-(h) sum of squares, then (Cout,H)@(H,HW) broadcast.
        sumsq = jnp.dot(y * y, s_reduce,
                        preferred_element_type=jnp.float32)        # (Cout, H)
        inv_norm = jax.lax.rsqrt(jnp.maximum(sumsq, _NORM_EPS * _NORM_EPS))
        inv_hw = jnp.dot(inv_norm, s_bcast,
                         preferred_element_type=jnp.float32)       # (Cout, HW)

        o_ref[bi] = y * inv_hw


def _largest_divisor_tile(n, per_item_bytes, budget_bytes):
    """Largest divisor of n whose block stays under a per-buffer VMEM budget."""
    bt = max(1, min(n, budget_bytes // max(per_item_bytes, 1)))
    while n % bt:
        bt -= 1
    return bt


def imim_forward(x_nchw, bn_gamma, bn_beta, conv_w, conv_b):
    """NCHW in, NCHW out (matches the PyTorch module). No transposes anywhere."""
    B, Cin, H, W = x_nchw.shape
    Cout = conv_w.shape[0]
    HW = H * W

    # Free, contiguous reshapes only (NCHW-native).
    x3 = x_nchw.reshape(B, Cin, HW).astype(jnp.float32)
    gamma2 = bn_gamma.reshape(Cin, 1).astype(jnp.float32)
    beta2 = bn_beta.reshape(Cin, 1).astype(jnp.float32)
    w2 = conv_w.reshape(Cout, Cin).astype(jnp.float32)
    b2 = conv_b.reshape(Cout, 1).astype(jnp.float32)

    # 0/1 segment matrices for the W-axis L2 norm (built once, outside the kernel).
    hw_idx = jnp.arange(HW, dtype=jnp.int32) // W                  # (HW,)
    h_idx = jnp.arange(H, dtype=jnp.int32)                         # (H,)
    s_reduce = (hw_idx[:, None] == h_idx[None, :]).astype(jnp.float32)   # (HW, H)
    s_bcast = (h_idx[:, None] == hw_idx[None, :]).astype(jnp.float32)    # (H, HW)

    # ---- pass 1: global BN batch statistics -> folded scale/shift ----
    bt1 = _largest_divisor_tile(B, Cin * HW * 4, 2 << 20)
    scale, shift = pl.pallas_call(
        functools.partial(_bn_stats_kernel, inv_n=1.0 / float(B * HW)),
        out_shape=(jax.ShapeDtypeStruct((Cin, 1), jnp.float32),
                   jax.ShapeDtypeStruct((Cin, 1), jnp.float32)),
        grid=(B // bt1,),
        in_specs=[
            pl.BlockSpec((bt1, Cin, HW), lambda i: (i, 0, 0)),
            pl.BlockSpec((Cin, 1), lambda i: (0, 0)),
            pl.BlockSpec((Cin, 1), lambda i: (0, 0)),
        ],
        out_specs=(pl.BlockSpec((Cin, 1), lambda i: (0, 0)),
                   pl.BlockSpec((Cin, 1), lambda i: (0, 0))),
        scratch_shapes=[pltpu.VMEM((Cin, 1), jnp.float32),
                        pltpu.VMEM((Cin, 1), jnp.float32)],
        compiler_params=pltpu.CompilerParams(
            dimension_semantics=("arbitrary",)),
    )(x3, gamma2, beta2)

    # ---- pass 2: BN apply + 1x1 conv + W-axis L2 norm, parallel over batch ----
    bt2 = _largest_divisor_tile(B, (Cin + Cout) * HW * 4, 2 << 20)
    out3 = pl.pallas_call(
        _bn_conv_norm_kernel,
        out_shape=jax.ShapeDtypeStruct((B, Cout, HW), jnp.float32),
        grid=(B // bt2,),
        in_specs=[
            pl.BlockSpec((bt2, Cin, HW), lambda b: (b, 0, 0)),
            pl.BlockSpec((Cin, 1), lambda b: (0, 0)),
            pl.BlockSpec((Cin, 1), lambda b: (0, 0)),
            pl.BlockSpec((Cout, Cin), lambda b: (0, 0)),
            pl.BlockSpec((Cout, 1), lambda b: (0, 0)),
            pl.BlockSpec((HW, H), lambda b: (0, 0)),
            pl.BlockSpec((H, HW), lambda b: (0, 0)),
        ],
        out_specs=pl.BlockSpec((bt2, Cout, HW), lambda b: (b, 0, 0)),
        compiler_params=pltpu.CompilerParams(
            dimension_semantics=("parallel",)),
    )(x3, scale, shift, w2, b2, s_reduce, s_bcast)

    return out3.reshape(B, Cout, H, W)   # free view back to NCHW


def imim_reference(x, bn_gamma, bn_beta, conv_w, conv_b):
    """Plain-JAX reference of the PyTorch forward (NCHW, training-mode BN)."""
    mean = jnp.mean(x, axis=(0, 2, 3), keepdims=True)
    var = jnp.mean((x - mean) ** 2, axis=(0, 2, 3), keepdims=True)
    xn = (x - mean) / jnp.sqrt(var + _BN_EPS)
    xn = xn * bn_gamma[None, :, None, None] + bn_beta[None, :, None, None]
    y = jnp.einsum("oc,bchw->bohw", conv_w[:, :, 0, 0], xn) + conv_b[None, :, None, None]
    norm = jnp.sqrt(jnp.sum(y * y, axis=-1, keepdims=True))
    return y / jnp.maximum(norm, _NORM_EPS)


if __name__ == "__main__":
    # Small shapes consistent with the module: channel_dim=4, gl_img_dim=8.
    B, Cin, H, W = 2, 4, 16, 16
    Cout = 8

    key = jax.random.PRNGKey(0)
    k_x, k_w, k_b = jax.random.split(key, 3)

    x = jax.random.normal(k_x, (B, Cin, H, W), dtype=jnp.float32)

    bn_gamma = jnp.ones((Cin,), dtype=jnp.float32)    # PyTorch BN default weight
    bn_beta = jnp.zeros((Cin,), dtype=jnp.float32)    # PyTorch BN default bias
    conv_w = 0.1 * jax.random.normal(k_w, (Cout, Cin, 1, 1), dtype=jnp.float32)
    conv_b = 0.1 * jax.random.normal(k_b, (Cout,), dtype=jnp.float32)

    out = jax.block_until_ready(imim_forward(x, bn_gamma, bn_beta, conv_w, conv_b))
    ref = imim_reference(x, bn_gamma, bn_beta, conv_w, conv_b)

    assert out.shape == (B, Cout, H, W), out.shape
    assert jnp.allclose(out, ref, rtol=1e-4, atol=1e-4), float(jnp.max(jnp.abs(out - ref)))

    print("KERNEL_OK")
</pallas_src>

<mosaic_0001>
module attributes {stable_mosaic.version = 11 : i64} {
  func.func @_bn_stats_kernel(%arg0: i32, %arg1: memref<2x4x256xf32, #tpu.memory_space<vmem>>, %arg2: memref<4x1xf32, #tpu.memory_space<vmem>>, %arg3: memref<4x1xf32, #tpu.memory_space<vmem>>, %arg4: memref<4x1xf32, #tpu.memory_space<vmem>>, %arg5: memref<4x1xf32, #tpu.memory_space<vmem>>, %arg6: memref<4x1xf32, #tpu.memory_space<vmem>>, %arg7: memref<4x1xf32, #tpu.memory_space<vmem>>) attributes {dimension_semantics = [#tpu.dimension_semantics<arbitrary>], iteration_bounds = array<i64: 1>, scalar_prefetch = 0 : i64, scratch_operands = 2 : i64, tpu.core_type = #tpu.core_type<tc>, window_params = [{transform_indices = @transform_0, window_bounds = array<i64: 2, 4, 256>}, {pipeline_mode = #tpu.pipeline_mode<synchronous>, transform_indices = @transform_1, window_bounds = array<i64: 4, 1>}, {pipeline_mode = #tpu.pipeline_mode<synchronous>, transform_indices = @transform_2, window_bounds = array<i64: 4, 1>}, {pipeline_mode = #tpu.pipeline_mode<synchronous>, transform_indices = @transform_3, window_bounds = array<i64: 4, 1>}, {pipeline_mode = #tpu.pipeline_mode<synchronous>, transform_indices = @transform_4, window_bounds = array<i64: 4, 1>}]} {
    %c0_i32 = arith.constant 0 : i32
    %0 = arith.cmpi eq, %arg0, %c0_i32 : i32
    %1 = arith.extui %0 : i1 to i32
    %c0_i32_0 = arith.constant 0 : i32
    %2 = arith.cmpi ne, %1, %c0_i32_0 : i32
    scf.if %2 {
      %cst_16 = arith.constant 0.000000e+00 : f32
      %20 = vector.broadcast %cst_16 : f32 to vector<4x1xf32>
      %c0_17 = arith.constant 0 : index
      %c0_18 = arith.constant 0 : index
      %21 = vector.load %arg6[%c0_17, %c0_18] : memref<4x1xf32, #tpu.memory_space<vmem>>, vector<4x1xf32>
      tpu.vector_store %arg6[%c0_17, %c0_18], %20 {strides = array<i32>} : memref<4x1xf32, #tpu.memory_space<vmem>>, vector<4x1xf32>,
      %cst_19 = arith.constant 0.000000e+00 : f32
      %22 = vector.broadcast %cst_19 : f32 to vector<4x1xf32>
      %c0_20 = arith.constant 0 : index
      %c0_21 = arith.constant 0 : index
      %23 = vector.load %arg7[%c0_20, %c0_21] : memref<4x1xf32, #tpu.memory_space<vmem>>, vector<4x1xf32>
      tpu.vector_store %arg7[%c0_20, %c0_21], %22 {strides = array<i32>} : memref<4x1xf32, #tpu.memory_space<vmem>>, vector<4x1xf32>,
    } else {
    }
    %c0 = arith.constant 0 : index
    %c0_1 = arith.constant 0 : index
    %c0_2 = arith.constant 0 : index
    %3 = vector.load %arg1[%c0, %c0_1, %c0_2] : memref<2x4x256xf32, #tpu.memory_space<vmem>>, vector<2x4x256xf32>
    %c0_3 = arith.constant 0 : index
    %c0_4 = arith.constant 0 : index
    %4 = vector.load %arg6[%c0_3, %c0_4] : memref<4x1xf32, #tpu.memory_space<vmem>>, vector<4x1xf32>
    %cst = arith.constant dense<0.000000e+00> : vector<2x4xf32>
    %5 = vector.multi_reduction <add>, %3, %cst [2] : vector<2x4x256xf32> to vector<2x4xf32>
    %6 = vector.shape_cast %5 : vector<2x4xf32> to vector<2x4x1xf32>
    %cst_5 = arith.constant dense<0.000000e+00> : vector<4x1xf32>
    %7 = vector.multi_reduction <add>, %6, %cst_5 [0] : vector<2x4x1xf32> to vector<4x1xf32>
    %8 = arith.addf %4, %7 : vector<4x1xf32>
    %c0_6 = arith.constant 0 : index
    %c0_7 = arith.constant 0 : index
    %9 = vector.load %arg6[%c0_6, %c0_7] : memref<4x1xf32, #tpu.memory_space<vmem>>, vector<4x1xf32>
    tpu.vector_store %arg6[%c0_6, %c0_7], %8 {strides = array<i32>} : memref<4x1xf32, #tpu.memory_space<vmem>>, vector<4x1xf32>,
    %c0_8 = arith.constant 0 : index
    %c0_9 = arith.constant 0 : index
    %10 = vector.load %arg7[%c0_8, %c0_9] : memref<4x1xf32, #tpu.memory_space<vmem>>, vector<4x1xf32>
    %11 = arith.mulf %3, %3 : vector<2x4x256xf32>
    %cst_10 = arith.constant dense<0.000000e+00> : vector<2x4xf32>
    %12 = vector.multi_reduction <add>, %11, %cst_10 [2] : vector<2x4x256xf32> to vector<2x4xf32>
    %13 = vector.shape_cast %12 : vector<2x4xf32> to vector<2x4x1xf32>
    %cst_11 = arith.constant dense<0.000000e+00> : vector<4x1xf32>
    %14 = vector.multi_reduction <add>, %13, %cst_11 [0] : vector<2x4x1xf32> to vector<4x1xf32>
    %15 = arith.addf %10, %14 : vector<4x1xf32>
    %c0_12 = arith.constant 0 : index
    %c0_13 = arith.constant 0 : index
    %16 = vector.load %arg7[%c0_12, %c0_13] : memref<4x1xf32, #tpu.memory_space<vmem>>, vector<4x1xf32>
    tpu.vector_store %arg7[%c0_12, %c0_13], %15 {strides = array<i32>} : memref<4x1xf32, #tpu.memory_space<vmem>>, vector<4x1xf32>,
    %c0_i32_14 = arith.constant 0 : i32
    %17 = arith.cmpi eq, %arg0, %c0_i32_14 : i32
    %18 = arith.extui %17 : i1 to i32
    %c0_i32_15 = arith.constant 0 : i32
    %19 = arith.cmpi ne, %18, %c0_i32_15 : i32
    scf.if %19 {
      %c0_16 = arith.constant 0 : index
      %c0_17 = arith.constant 0 : index
      %20 = vector.load %arg6[%c0_16, %c0_17] : memref<4x1xf32, #tpu.memory_space<vmem>>, vector<4x1xf32>
      %cst_18 = arith.constant 0.001953125 : f32
      %21 = vector.broadcast %cst_18 : f32 to vector<4x1xf32>
      %22 = arith.mulf %20, %21 : vector<4x1xf32>
      %c0_19 = arith.constant 0 : index
      %c0_20 = arith.constant 0 : index
      %23 = vector.load %arg7[%c0_19, %c0_20] : memref<4x1xf32, #tpu.memory_space<vmem>>, vector<4x1xf32>
      %cst_21 = arith.constant 0.001953125 : f32
      %24 = vector.broadcast %cst_21 : f32 to vector<4x1xf32>
      %25 = arith.mulf %23, %24 : vector<4x1xf32>
      %26 = arith.mulf %22, %22 : vector<4x1xf32>
      %27 = arith.subf %25, %26 : vector<4x1xf32>
      %cst_22 = arith.constant 9.99999974E-6 : f32
      %28 = vector.broadcast %cst_22 : f32 to vector<4x1xf32>
      %29 = arith.addf %27, %28 : vector<4x1xf32>
      %30 = math.rsqrt %29 : vector<4x1xf32>
      %c0_23 = arith.constant 0 : index
      %c0_24 = arith.constant 0 : index
      %31 = vector.load %arg2[%c0_23, %c0_24] : memref<4x1xf32, #tpu.memory_space<vmem>>, vector<4x1xf32>
      %32 = arith.mulf %31, %30 : vector<4x1xf32>
      %c0_25 = arith.constant 0 : index
      %c0_26 = arith.constant 0 : index
      %33 = vector.load %arg4[%c0_25, %c0_26] : memref<4x1xf32, #tpu.memory_space<vmem>>, vector<4x1xf32>
      tpu.vector_store %arg4[%c0_25, %c0_26], %32 {strides = array<i32>} : memref<4x1xf32, #tpu.memory_space<vmem>>, vector<4x1xf32>,
      %c0_27 = arith.constant 0 : index
      %c0_28 = arith.constant 0 : index
      %34 = vector.load %arg3[%c0_27, %c0_28] : memref<4x1xf32, #tpu.memory_space<vmem>>, vector<4x1xf32>
      %35 = arith.mulf %22, %32 : vector<4x1xf32>
      %36 = arith.subf %34, %35 : vector<4x1xf32>
      %c0_29 = arith.constant 0 : index
      %c0_30 = arith.constant 0 : index
      %37 = vector.load %arg5[%c0_29, %c0_30] : memref<4x1xf32, #tpu.memory_space<vmem>>, vector<4x1xf32>
      tpu.vector_store %arg5[%c0_29, %c0_30], %36 {strides = array<i32>} : memref<4x1xf32, #tpu.memory_space<vmem>>, vector<4x1xf32>,
    } else {
    }
    return
  }
  func.func @transform_0(%arg0: i32) -> (i32, i32, i32) {
    %c0_i32 = arith.constant 0 : i32
    %c0_i32_0 = arith.constant 0 : i32
    %c0_i32_1 = arith.constant 0 : i32
    return %arg0, %c0_i32, %c0_i32_0 : i32, i32, i32
  }
  func.func @transform_1(%arg0: i32) -> (i32, i32) {
    %c0_i32 = arith.constant 0 : i32
    %c0_i32_0 = arith.constant 0 : i32
    %c0_i32_1 = arith.constant 0 : i32
    return %c0_i32, %c0_i32_0 : i32, i32
  }
  func.func @transform_2(%arg0: i32) -> (i32, i32) {
    %c0_i32 = arith.constant 0 : i32
    %c0_i32_0 = arith.constant 0 : i32
    %c0_i32_1 = arith.constant 0 : i32
    return %c0_i32, %c0_i32_0 : i32, i32
  }
  func.func @transform_3(%arg0: i32) -> (i32, i32) {
    %c0_i32 = arith.constant 0 : i32
    %c0_i32_0 = arith.constant 0 : i32
    %c0_i32_1 = arith.constant 0 : i32
    return %c0_i32, %c0_i32_0 : i32, i32
  }
  func.func @transform_4(%arg0: i32) -> (i32, i32) {
    %c0_i32 = arith.constant 0 : i32
    %c0_i32_0 = arith.constant 0 : i32
    %c0_i32_1 = arith.constant 0 : i32
    return %c0_i32, %c0_i32_0 : i32, i32
  }
}

</mosaic_0001>

<llo_original>
// kernel: tpu_custom_call.1
$region0: #{tpu_custom_call.1}
  #allocation0 [shape = 'u32[]', space=smem, size = 0x4, offset = 0x4, fixed_abs, tag = 'smem constant byte address 0x4 - core index']
  #allocation1 [shape = 'u32[144,128]{1,0:T(1,128)}', space=vmem, size = 0x12000, scoped, tag = 'internal scratch']
  #allocation2 [shape = 'f32[4,1]{1,0:T(4,128)}', space=vmem, size = 0x800, scoped, tag = 'scratch operand']
  #allocation3 [shape = 'f32[4,1]{1,0:T(4,128)}', space=vmem, size = 0x800, scoped, tag = 'scratch operand']
  %s0 = inlined_call_operand.hbm [shape: f32[2,4,256], index: 0, kind: input, shape index: {}]
  %s1 = inlined_call_operand.vmem [shape: f32[4,1], index: 1, kind: input, shape index: {}]
  %s2 = inlined_call_operand.vmem [shape: f32[4,1], index: 2, kind: input, shape index: {}]
  %s3 = inlined_call_operand.vmem [shape: f32[4,1], index: 3, kind: output, shape index: {0}]
  %s4 = inlined_call_operand.vmem [shape: f32[4,1], index: 4, kind: output, shape index: {1}]
  %5 = xla_tuple %s3, %s4
  %s6 = sld [smem:[#allocation0]]
  $region42: #{tpu_custom_call.1} parent=0
    _
  %s8 = ssub.s32 1, %s6
  %s9 = scalar_select 0, %s8, %s6
  $region1: #{tpu_custom_call.1} parent=0
    #allocation4 [shape = 'u8[8192]{0}', space=vmem, size = 0x2000, scoped, tag = 'input window, operand 0, single buffered']
    #allocation5 [shape = 's32[1]{0}', space=sflag, size = 0x4, scoped, tag = 'scoped memory for tpu_custom_call.1']
    %10 = vsyncpa [#allocation5], 0
    // Predicated region
    $region2: #{tpu_custom_call.1} parent=1 // pred_check
      _
    $region3: #{tpu_custom_call.1} parent=1 // pred_check_branch
      %12 = sbr.rel (0) target = $region5
    $region4: #{tpu_custom_call.1} parent=1 // pred_region
      %s14 = ssub.s32 256, 256
      %15 = vsyncadd [#allocation5], %s14
      %s16 = sshll.u32 [#allocation4], 4
      %s17 = int_to_ptr.vmem [resolvable:$true] %s16
      %22 = dma.hbm_to_vmem [thread:$0]  %s0, 256, %s17, [#allocation5], 128, 128, 8
    $region5: #{tpu_custom_call.1} parent=1 // pred_fallthru
      _
    // Predicated region
    $region6: #{tpu_custom_call.1} parent=1 // pred_check
      _
    $region7: #{tpu_custom_call.1} parent=1 // pred_check_branch
      %24 = sbr.rel (0) target = $region9
    $region8: #{tpu_custom_call.1} parent=1 // pred_region
      _
    $region9: #{tpu_custom_call.1} parent=1 // pred_fallthru
      _
    // Predicated region
    $region10: #{tpu_custom_call.1} parent=1 // pred_check
      _
    $region11: #{tpu_custom_call.1} parent=1 // pred_check_branch
      %26 = sbr.rel (0) target = $region13
    $region12: #{tpu_custom_call.1} parent=1 // pred_region
      _
    $region13: #{tpu_custom_call.1} parent=1 // pred_fallthru
      _
    // Predicated region
    $region14: #{tpu_custom_call.1} parent=1 // pred_check
      _
    $region15: #{tpu_custom_call.1} parent=1 // pred_check_branch
      %28 = sbr.rel (0) target = $region17
    $region16: #{tpu_custom_call.1} parent=1 // pred_region
      %29 = dma.done [#allocation5], 256
    $region17: #{tpu_custom_call.1} parent=1 // pred_fallthru
      _
    %p30 = scmp.eq.s32.totalorder 0, 0
    // Predicated region
    $region18: #{tpu_custom_call.1} parent=1 // pred_check
      %p31 = pneg %p30
    $region19: #{tpu_custom_call.1} parent=1 // pred_check_branch
      %33 = sbr.rel (%p31) target = $region21
    $region20: #{tpu_custom_call.1} parent=1 // pred_region
      %vm34 = vcmask 3072
      %35 = vst.msk [vmem:[#allocation2] sm:$0xf] %vm34, 0.0
      %36 = vst.msk [vmem:[#allocation3] sm:$0xf] %vm34, 0.0
    $region21: #{tpu_custom_call.1} parent=1 // pred_fallthru
      _
    %v37 = vld [vmem:[#allocation4] sm:$0xff]
    %v38 = vld [vmem:[#allocation4 + $0x8] sm:$0xff]
    %v39 = vld [vmem:[#allocation2] sm:$0xf]
    %v42 = vcombine.high %v37, %v37
    %v43 = vcombine.high %v38, %v38
    %vm46 = vcmask 1043456
    %v47 = vsel %vm46, %v37, 0.0
    %v48 = vsel %vm46, %v42, 0.0
    %v49 = vadd.f32 %v47, %v48
    %50 = vadd.xlane.f32.xlu0 %v49
    %v51 = vpop.xlane.xlu0 %50
    %v52 = vsel %vm46, %v38, 0.0
    %v53 = vsel %vm46, %v43, 0.0
    %v54 = vadd.f32 %v52, %v53
    %55 = vadd.xlane.f32.xlu0 %v54
    %v56 = vpop.xlane.xlu0 %55
    %v57 = vsel %vm46, %v51, 0.0
    %v58 = vsel %vm46, %v56, 0.0
    %v59 = vadd.f32 %v57, %v58
    %v60 = vadd.f32 %v39, %v59
    %vm61 = vcmask 3072
    %62 = vst.msk [vmem:[#allocation2] sm:$0xf] %vm61, %v60
    %v63 = vld [vmem:[#allocation3] sm:$0xf]
    %v64 = vmul.f32 %v37, %v37
    %v65 = vmul.f32 %v38, %v38
    %v68 = vcombine.high %v64, %v64
    %v69 = vcombine.high %v65, %v65
    %v72 = vsel %vm46, %v64, 0.0
    %v73 = vsel %vm46, %v68, 0.0
    %v74 = vadd.f32 %v72, %v73
    %75 = vadd.xlane.f32.xlu0 %v74
    %v76 = vpop.xlane.xlu0 %75
    %v77 = vsel %vm46, %v65, 0.0
    %v78 = vsel %vm46, %v69, 0.0
    %v79 = vadd.f32 %v77, %v78
    %80 = vadd.xlane.f32.xlu0 %v79
    %v81 = vpop.xlane.xlu0 %80
    %v82 = vsel %vm46, %v76, 0.0
    %v83 = vsel %vm46, %v81, 0.0
    %v84 = vadd.f32 %v82, %v83
    %v85 = vadd.f32 %v63, %v84
    %86 = vst.msk [vmem:[#allocation3] sm:$0xf] %vm61, %v85
    // Predicated region
    $region22: #{tpu_custom_call.1} parent=1 // pred_check
      %p87 = pneg %p30
    $region23: #{tpu_custom_call.1} parent=1 // pred_check_branch
      %89 = sbr.rel (%p87) target = $region25
    $region24: #{tpu_custom_call.1} parent=1 // pred_region
      %v90 = vld [vmem:[#allocation2] sm:$0xf]
      %v91 = vmul.f32 %v90, 0.001953125
      %v92 = vld [vmem:[#allocation3] sm:$0xf]
      %v93 = vmul.f32 %v92, 0.001953125
      %v94 = vmul.f32 %v91, %v91
      %v95 = vsub.f32 %v93, %v94
      %v96 = vadd.f32 %v95, 1e-05
      %v97 = vrsqrt.pop %v96
      %v98 = vld [vmem:[%s1] sm:$0xf]
      %v99 = vmul.f32 %v98, %v97
      %100 = vst.msk [vmem:[%s3] sm:$0xf] %vm61, %v99
      %v101 = vld [vmem:[%s2] sm:$0xf]
      %v102 = vmul.f32 %v91, %v99
      %v103 = vsub.f32 %v101, %v102
      %104 = vst.msk [vmem:[%s4] sm:$0xf] %vm61, %v103
    $region25: #{tpu_custom_call.1} parent=1 // pred_fallthru
      _
    // Predicated region
    $region26: #{tpu_custom_call.1} parent=1 // pred_check
      _
    $region27: #{tpu_custom_call.1} parent=1 // pred_check_branch
      %106 = sbr.rel (0) target = $region29
    $region28: #{tpu_custom_call.1} parent=1 // pred_region
      _
    $region29: #{tpu_custom_call.1} parent=1 // pred_fallthru
      _
    // Predicated region
    $region30: #{tpu_custom_call.1} parent=1 // pred_check
      _
    $region31: #{tpu_custom_call.1} parent=1 // pred_check_branch
      %108 = sbr.rel (0) target = $region33
    $region32: #{tpu_custom_call.1} parent=1 // pred_region
      _
    $region33: #{tpu_custom_call.1} parent=1 // pred_fallthru
      _
    // Predicated region
    $region34: #{tpu_custom_call.1} parent=1 // pred_check
      _
    $region35: #{tpu_custom_call.1} parent=1 // pred_check_branch
      %110 = sbr.rel (0) target = $region37
    $region36: #{tpu_custom_call.1} parent=1 // pred_region
      _
    $region37: #{tpu_custom_call.1} parent=1 // pred_fallthru
      _
    // Predicated region
    $region38: #{tpu_custom_call.1} parent=1 // pred_check
      _
    $region39: #{tpu_custom_call.1} parent=1 // pred_check_branch
      %112 = sbr.rel (0) target = $region41
    $region40: #{tpu_custom_call.1} parent=1 // pred_region
      _
    $region41: #{tpu_custom_call.1} parent=1 // pred_fallthru
      _
    %113 = vsyncpa [#allocation5], 1

</llo_original>
